<compile_context>
chip_gen: v7x
topology: tpu7x:2x2x1
jax: 0.10.0
libtpu: 0.0.40
codegen_flags: <defaults>
</compile_context>

<pallas_src>
import functools

import jax
import jax.numpy as jnp
from jax.experimental import pallas as pl
from jax.experimental.pallas import tpu as pltpu

_MIB = 1024 * 1024


def _pixelwise_norm_kernel(x_ref, o_ref, *, inv_c):
    # Block shape is (B, C, T) or (B, C, S_sub, 128); channel axis is always axis 1.
    x = x_ref[...]
    xf = x.astype(jnp.float32)                          # f32 accumulation path
    sum_sq = jnp.sum(xf * xf, axis=1, keepdims=True)    # per-pixel channel reduction
    inv = jax.lax.rsqrt(sum_sq * inv_c + 1e-8)          # 1/sqrt(mean(x^2) + eps)
    o_ref[...] = (xf * inv).astype(o_ref.dtype)


def _vmem_capacity_bytes():
    try:
        info = pltpu.get_tpu_info()
        cap = int(getattr(info, "vmem_capacity_bytes", 0) or 0)
        if cap > 0:
            return cap
    except Exception:
        pass
    return 128 * _MIB  # conservative default (v5e/v6e)


def _vmem_budget(block_target_bytes=None):
    """Pick per-block byte target and vmem_limit from the device's VMEM capacity."""
    cap = _vmem_capacity_bytes()
    if block_target_bytes is None:
        # 4 buffers (double-buffered input + output) must fit in ~60% of VMEM.
        # 128 MiB parts (v5e/v6e) -> 12 MiB blocks; 64 MiB parts (v7x) -> ~9.6 MiB.
        block_target_bytes = min(12 * _MIB, (cap * 3 // 5) // 4)
        block_target_bytes = max(block_target_bytes, 1 * _MIB)
    vmem_limit = 4 * block_target_bytes + 8 * _MIB
    vmem_limit = min(vmem_limit, max(cap - 8 * _MIB, 16 * _MIB))
    vmem_limit = max(vmem_limit, 16 * _MIB)
    return int(block_target_bytes), int(vmem_limit)


def pixelwise_norm(x, *, block_target_bytes=None):
    """x: (N, C, H, W) -> (N, C, H, W), normalized per pixel across channels."""
    N, C, H, W = x.shape
    spatial = H * W
    itemsize = x.dtype.itemsize
    block_target, vmem_limit = _vmem_budget(block_target_bytes)

    kernel = functools.partial(_pixelwise_norm_kernel, inv_c=1.0 / C)
    compiler_params = pltpu.CompilerParams(
        dimension_semantics=("parallel", "parallel"),
        vmem_limit_bytes=vmem_limit,
    )

    full_image_bytes = C * spatial * itemsize

    if spatial % 128 == 0:
        # Dense layout: spatial on both sublane and lane axes.
        s_sub = spatial // 128
        x_r = x.reshape(N, C, s_sub, 128)
        if full_image_bytes <= block_target:
            # Whole image per block; tile over batch so each step moves multi-MiB.
            b_tile = int(max(1, min(N, block_target // max(full_image_bytes, 1))))
            grid = (pl.cdiv(N, b_tile), 1)
            block = (b_tile, C, s_sub, 128)
            index_map = lambda n, s: (n, 0, 0, 0)
        else:
            # Tile over sublane-rows (multiples of 8).
            srow_bytes = C * 128 * itemsize
            t = (block_target // max(srow_bytes, 1)) // 8 * 8
            t = int(max(8, min(t, s_sub)))
            grid = (N, pl.cdiv(s_sub, t))
            block = (1, C, t, 128)
            index_map = lambda n, s: (n, 0, s, 0)
        out_shape = jax.ShapeDtypeStruct((N, C, s_sub, 128), x.dtype)
    else:
        # Fallback 3-D layout for odd resolutions.
        x_r = x.reshape(N, C, spatial)
        if full_image_bytes <= block_target:
            b_tile = int(max(1, min(N, block_target // max(full_image_bytes, 1))))
            grid = (pl.cdiv(N, b_tile), 1)
            block = (b_tile, C, spatial)
            index_map = lambda n, s: (n, 0, 0)
        else:
            row_bytes = C * itemsize
            t = (block_target // max(row_bytes, 1)) // 128 * 128
            t = int(max(128, t))
            if t >= spatial:
                t = spatial
            grid = (N, pl.cdiv(spatial, t))
            block = (1, C, t)
            index_map = lambda n, s: (n, 0, s)
        out_shape = jax.ShapeDtypeStruct((N, C, spatial), x.dtype)

    y = pl.pallas_call(
        kernel,
        out_shape=out_shape,
        grid_spec=pltpu.PrefetchScalarGridSpec(
            num_scalar_prefetch=0,
            grid=grid,
            in_specs=[pl.BlockSpec(block, index_map)],
            out_specs=pl.BlockSpec(block, index_map),
        ),
        compiler_params=compiler_params,
    )(x_r)

    return y.reshape(N, C, H, W)


def pixelwise_norm_ref(x):
    # Pure-JAX reference matching the PyTorch module.
    xf = x.astype(jnp.float32)
    factor = jnp.sqrt(jnp.mean(xf * xf, axis=1, keepdims=True) + 1e-8)
    return (xf / factor).astype(x.dtype)


if __name__ == "__main__":
    key = jax.random.PRNGKey(0)
    k0, k1, k2, k3, k4 = jax.random.split(key, 5)

    def check(x, name, **kw):
        y = jax.block_until_ready(pixelwise_norm(x, **kw))
        y_ref = pixelwise_norm_ref(x)
        assert y.shape == x.shape and y.dtype == x.dtype, name
        assert jnp.allclose(y, y_ref, atol=1e-5, rtol=1e-5), f"mismatch vs reference ({name})"

    # Small shape consistent with the module: batch-tiled, sublane+lane-dense path.
    check(jax.random.normal(k0, (2, 4, 16, 16), dtype=jnp.float32), "small 4D batch-tiled")

    # Odd resolution (H*W not multiple of 128): 3-D fallback, batch-tiled.
    check(jax.random.normal(k1, (2, 3, 7, 9), dtype=jnp.float32), "3D fallback")

    # Force the 4-D sublane-row-tiled path with a partial tail block (tiny byte target).
    check(jax.random.normal(k2, (1, 4, 40, 64), dtype=jnp.float32),
          "4D spatial-tiled + tail", block_target_bytes=16 * 1024)

    # Force the 3-D lane-tiled path with a partial tail block.
    check(jax.random.normal(k3, (1, 4, 20, 30), dtype=jnp.float32),
          "3D lane-tiled + tail", block_target_bytes=2 * 1024)

    # Partial batch tail block (N=3, b_tile=2).
    check(jax.random.normal(k4, (3, 4, 16, 16), dtype=jnp.float32),
          "batch tail", block_target_bytes=8 * 1024)

    print("KERNEL_OK")
</pallas_src>

<mosaic_0001>
module attributes {stable_mosaic.version = 11 : i64} {
  func.func @_pixelwise_norm_kernel(%arg0: i32, %arg1: i32, %arg2: memref<2x4x2x128xf32, #tpu.memory_space<vmem>>, %arg3: memref<2x4x2x128xf32, #tpu.memory_space<vmem>>) attributes {dimension_semantics = [#tpu.dimension_semantics<parallel>, #tpu.dimension_semantics<parallel>], iteration_bounds = array<i64: 1, 1>, scalar_prefetch = 0 : i64, scratch_operands = 0 : i64, tpu.core_type = #tpu.core_type<tc>, window_params = [{transform_indices = @transform_0, window_bounds = array<i64: 2, 4, 2, 128>}, {transform_indices = @transform_1, window_bounds = array<i64: 2, 4, 2, 128>}]} {
    %c0 = arith.constant 0 : index
    %c0_0 = arith.constant 0 : index
    %c0_1 = arith.constant 0 : index
    %c0_2 = arith.constant 0 : index
    %0 = vector.load %arg2[%c0, %c0_0, %c0_1, %c0_2] : memref<2x4x2x128xf32, #tpu.memory_space<vmem>>, vector<2x4x2x128xf32>
    %1 = arith.mulf %0, %0 : vector<2x4x2x128xf32>
    %cst = arith.constant dense<0.000000e+00> : vector<2x2x128xf32>
    %2 = vector.multi_reduction <add>, %1, %cst [1] : vector<2x4x2x128xf32> to vector<2x2x128xf32>
    %3 = vector.shape_cast %2 : vector<2x2x128xf32> to vector<2x1x2x128xf32>
    %cst_3 = arith.constant 2.500000e-01 : f32
    %4 = vector.broadcast %cst_3 : f32 to vector<2x1x2x128xf32>
    %5 = arith.mulf %3, %4 : vector<2x1x2x128xf32>
    %cst_4 = arith.constant 9.99999993E-9 : f32
    %6 = vector.broadcast %cst_4 : f32 to vector<2x1x2x128xf32>
    %7 = arith.addf %5, %6 : vector<2x1x2x128xf32>
    %8 = math.rsqrt %7 : vector<2x1x2x128xf32>
    %9 = vector.broadcast %8 : vector<2x1x2x128xf32> to vector<2x4x2x128xf32>
    %10 = arith.mulf %0, %9 : vector<2x4x2x128xf32>
    %c0_5 = arith.constant 0 : index
    %c0_6 = arith.constant 0 : index
    %c0_7 = arith.constant 0 : index
    %c0_8 = arith.constant 0 : index
    %11 = vector.load %arg3[%c0_5, %c0_6, %c0_7, %c0_8] : memref<2x4x2x128xf32, #tpu.memory_space<vmem>>, vector<2x4x2x128xf32>
    tpu.vector_store %arg3[%c0_5, %c0_6, %c0_7, %c0_8], %10 {strides = array<i32>} : memref<2x4x2x128xf32, #tpu.memory_space<vmem>>, vector<2x4x2x128xf32>,
    return
  }
  func.func @transform_0(%arg0: i32, %arg1: i32) -> (i32, i32, i32, i32) {
    %c0_i32 = arith.constant 0 : i32
    %c0_i32_0 = arith.constant 0 : i32
    %c0_i32_1 = arith.constant 0 : i32
    %c0_i32_2 = arith.constant 0 : i32
    return %arg0, %c0_i32, %c0_i32_0, %c0_i32_1 : i32, i32, i32, i32
  }
  func.func @transform_1(%arg0: i32, %arg1: i32) -> (i32, i32, i32, i32) {
    %c0_i32 = arith.constant 0 : i32
    %c0_i32_0 = arith.constant 0 : i32
    %c0_i32_1 = arith.constant 0 : i32
    %c0_i32_2 = arith.constant 0 : i32
    return %arg0, %c0_i32, %c0_i32_0, %c0_i32_1 : i32, i32, i32, i32
  }
}

</mosaic_0001>

<llo_original>
// kernel: tpu_custom_call.1
$region0: #{tpu_custom_call.1}
  #allocation0 [shape = 'u32[]', space=smem, size = 0x4, offset = 0x4, fixed_abs, tag = 'smem constant byte address 0x4 - core index']
  #allocation1 [shape = 'u32[144,128]{1,0:T(1,128)}', space=vmem, size = 0x12000, scoped, tag = 'internal scratch']
  %s0 = inlined_call_operand.hbm [shape: f32[2,4,2,128], index: 0, kind: input, shape index: {}]
  %s1 = inlined_call_operand.hbm [shape: f32[2,4,2,128], index: 1, kind: output, shape index: {}]
  %s2 = sld [smem:[#allocation0]]
  $region18: #{tpu_custom_call.1} parent=0
    _
  %s4 = ssub.s32 1, %s2
  %s5 = scalar_select 0, %s4, %s2
  $region1: #{tpu_custom_call.1} parent=0
    #allocation2 [shape = 'u8[8192]{0}', space=vmem, size = 0x2000, scoped, tag = 'input window, operand 0, single buffered']
    #allocation3 [shape = 's32[1]{0}', space=sflag, size = 0x4, scoped, tag = 'scoped memory for tpu_custom_call.1']
    #allocation4 [shape = 's32[1]{0}', space=sflag, size = 0x4, scoped, tag = 'scoped memory for tpu_custom_call.1']
    #allocation5 [shape = 'u8[8192]{0}', space=vmem, size = 0x2000, scoped, tag = 'output window, operand 0, single buffered']
    %6 = vsyncpa [#allocation3], 0
    %7 = vsyncpa [#allocation4], 0
    // Predicated region
    $region2: #{tpu_custom_call.1} parent=1 // pred_check
      _
    $region3: #{tpu_custom_call.1} parent=1 // pred_check_branch
      %9 = sbr.rel (0) target = $region5
    $region4: #{tpu_custom_call.1} parent=1 // pred_region
      %s11 = ssub.s32 256, 256
      %12 = vsyncadd [#allocation3], %s11
      %s13 = sshll.u32 [#allocation2], 4
      %s14 = int_to_ptr.vmem [resolvable:$true] %s13
      %19 = dma.hbm_to_vmem [thread:$0]  %s0, 256, %s14, [#allocation3], 32, 32, 2
    $region5: #{tpu_custom_call.1} parent=1 // pred_fallthru
      _
    // Predicated region
    $region6: #{tpu_custom_call.1} parent=1 // pred_check
      _
    $region7: #{tpu_custom_call.1} parent=1 // pred_check_branch
      %21 = sbr.rel (0) target = $region9
    $region8: #{tpu_custom_call.1} parent=1 // pred_region
      %22 = dma.done [#allocation3], 256
    $region9: #{tpu_custom_call.1} parent=1 // pred_fallthru
      _
    %v23 = vld [vmem:[#allocation2] sm:$0x3]
    %v24 = vld [vmem:[#allocation2 + $0x2] sm:$0x3]
    %v25 = vld [vmem:[#allocation2 + $0x4] sm:$0x3]
    %v26 = vld [vmem:[#allocation2 + $0x6] sm:$0x3]
    %v27 = vld [vmem:[#allocation2 + $0x8] sm:$0x3]
    %v28 = vld [vmem:[#allocation2 + $0xa] sm:$0x3]
    %v29 = vld [vmem:[#allocation2 + $0xc] sm:$0x3]
    %v30 = vld [vmem:[#allocation2 + $0xe] sm:$0x3]
    %v31 = vmul.f32 %v23, %v23
    %v32 = vmul.f32 %v24, %v24
    %v33 = vmul.f32 %v25, %v25
    %v34 = vmul.f32 %v26, %v26
    %v35 = vmul.f32 %v27, %v27
    %v36 = vmul.f32 %v28, %v28
    %v37 = vmul.f32 %v29, %v29
    %v38 = vmul.f32 %v30, %v30
    %vm39 = vcmask 1041408
    %v40 = vsel %vm39, %v31, 0.0
    %v41 = vsel %vm39, %v32, 0.0
    %v42 = vadd.f32 %v40, %v41
    %v43 = vsel %vm39, %v33, 0.0
    %v44 = vadd.f32 %v42, %v43
    %v45 = vsel %vm39, %v34, 0.0
    %v46 = vadd.f32 %v44, %v45
    %v47 = vsel %vm39, %v35, 0.0
    %v48 = vsel %vm39, %v36, 0.0
    %v49 = vadd.f32 %v47, %v48
    %v50 = vsel %vm39, %v37, 0.0
    %v51 = vadd.f32 %v49, %v50
    %v52 = vsel %vm39, %v38, 0.0
    %v53 = vadd.f32 %v51, %v52
    %v54 = vmul.f32 %v46, 0.25
    %v55 = vmul.f32 %v53, 0.25
    %v56 = vadd.f32 %v54, 1e-08
    %v57 = vadd.f32 %v55, 1e-08
    %v58 = vrsqrt.pop %v56
    %v59 = vrsqrt.pop %v57
    %v60 = vmul.f32 %v23, %v58
    %v61 = vmul.f32 %v24, %v58
    %v62 = vmul.f32 %v25, %v58
    %v63 = vmul.f32 %v26, %v58
    %v64 = vmul.f32 %v27, %v59
    %v65 = vmul.f32 %v28, %v59
    %v66 = vmul.f32 %v29, %v59
    %v67 = vmul.f32 %v30, %v59
    %68 = vst [vmem:[#allocation5] sm:$0x3] %v60
    %69 = vst [vmem:[#allocation5 + $0x2] sm:$0x3] %v61
    %70 = vst [vmem:[#allocation5 + $0x4] sm:$0x3] %v62
    %71 = vst [vmem:[#allocation5 + $0x6] sm:$0x3] %v63
    %72 = vst [vmem:[#allocation5 + $0x8] sm:$0x3] %v64
    %73 = vst [vmem:[#allocation5 + $0xa] sm:$0x3] %v65
    %74 = vst [vmem:[#allocation5 + $0xc] sm:$0x3] %v66
    %75 = vst [vmem:[#allocation5 + $0xe] sm:$0x3] %v67
    // Predicated region
    $region10: #{tpu_custom_call.1} parent=1 // pred_check
      _
    $region11: #{tpu_custom_call.1} parent=1 // pred_check_branch
      %77 = sbr.rel (0) target = $region13
    $region12: #{tpu_custom_call.1} parent=1 // pred_region
      %s79 = ssub.s32 256, 256
      %80 = vsyncadd [#allocation4], %s79
      %s81 = sshll.u32 [#allocation5], 4
      %s82 = int_to_ptr.vmem [resolvable:$true] %s81
      %87 = dma.vmem_to_hbm [thread:$0]  %s82, 256, %s1, [#allocation4], 32, 32, 2
    $region13: #{tpu_custom_call.1} parent=1 // pred_fallthru
      _
    // Predicated region
    $region14: #{tpu_custom_call.1} parent=1 // pred_check
      _
    $region15: #{tpu_custom_call.1} parent=1 // pred_check_branch
      %89 = sbr.rel (0) target = $region17
    $region16: #{tpu_custom_call.1} parent=1 // pred_region
      %90 = dma.done [#allocation4], 256
    $region17: #{tpu_custom_call.1} parent=1 // pred_fallthru
      _
    %91 = vsyncpa [#allocation3], 1
    %92 = vsyncpa [#allocation4], 1

</llo_original>
